<compile_context>
chip_gen: v5e
topology: v5e:2x2
jax: 0.10.0
libtpu: 0.0.40
codegen_flags: <defaults>
</compile_context>

<pallas_src>
import math

import jax
import jax.numpy as jnp
from jax import lax
from jax.experimental import pallas as pl
from jax.experimental.pallas import tpu as pltpu

HOP = 40                       # synthetic downsampling hop of the "featurizer"
LINEAR_DIM = 32                # linear_dim (real model: 768)
HIDDEN = LINEAR_DIM // 2       # per-direction LSTM hidden size (H = 16)
VP = 128                       # lane-padded vocab+1 width
LANG2VOCAB = {"en": 10, "zh": 12}
LANGS = list(LANG2VOCAB.keys())


# ------------- fused featurizer + LSTM input projection (all heads) ----------
def _proj_kernel(x_ref, w_ref, b_ref, o_ref):
    # one MXU matmul per (head, row-tile): frames @ (feat_w @ W_ih) + b
    o_ref[0] = (
        jnp.dot(x_ref[...], w_ref[0], preferred_element_type=jnp.float32)
        + b_ref[0]
    )


def input_projection(frames, w_fold, b_fold, *, row_block):
    TBP, hop = frames.shape
    NH, _, GT = w_fold.shape           # GT = 8*H (packed fwd|bwd gates)
    assert TBP % row_block == 0
    return pl.pallas_call(
        _proj_kernel,
        out_shape=jax.ShapeDtypeStruct((NH, TBP, GT), jnp.float32),
        grid=(NH, TBP // row_block),
        in_specs=[
            pl.BlockSpec((row_block, hop), lambda h, r: (r, 0)),
            pl.BlockSpec((1, hop, GT), lambda h, r: (h, 0, 0)),
            pl.BlockSpec((1, 1, GT), lambda h, r: (h, 0, 0)),
        ],
        out_specs=pl.BlockSpec((1, row_block, GT), lambda h, r: (h, r, 0)),
        compiler_params=pltpu.CompilerParams(
            dimension_semantics=("parallel", "parallel")),
    )(frames, w_fold, b_fold)


# -------------- fused BiLSTM recurrence + output Linear (all heads) ----------
def _bilstm_heads_kernel(len_ref, gin_ref, whh_ref, woutf_ref, woutb_ref,
                         bout_ref, o_ref, histf, histb):
    T = gin_ref.shape[1]
    BP = gin_ref.shape[2]
    GT = gin_ref.shape[3]              # = 8*H, gate layout [i_f|i_b|f_f|f_b|g_f|g_b|o_f|o_b]
    H = histf.shape[2]
    H2 = 2 * H

    # hoisted loop-invariant vectors / lane masks (no per-iter broadcasts)
    len_vec = len_ref[...]                                     # (BP, 1) int32
    lane_g = lax.broadcasted_iota(jnp.int32, (1, GT), 1)
    fwd_gate_lane = ((lane_g // H) % 2) == 0                   # fwd gate lanes
    lane_h = lax.broadcasted_iota(jnp.int32, (1, H2), 1)
    fwd_dir_lane = (lane_h < H).astype(jnp.float32)            # [h_f | h_b] lanes

    def step(t, carry):
        h, c = carry                                           # (BP, 2H) each
        s = T - 1 - t
        vf = (t < len_vec).astype(jnp.float32)                 # (BP, 1)
        vb = (s < len_vec).astype(jnp.float32)                 # (BP, 1)

        # forward gates come from time t, backward gates from time s
        g_in = jnp.where(fwd_gate_lane, gin_ref[0, t], gin_ref[0, s])
        # one block-diagonal matmul covers both directions' recurrence
        g = g_in + jnp.dot(h, whh_ref[0], preferred_element_type=jnp.float32)

        i_g = jax.nn.sigmoid(g[:, 0 * H2:1 * H2])              # [i_f | i_b]
        f_g = jax.nn.sigmoid(g[:, 1 * H2:2 * H2])              # [f_f | f_b]
        g_g = jnp.tanh(g[:, 2 * H2:3 * H2])                    # [g_f | g_b]
        o_g = jax.nn.sigmoid(g[:, 3 * H2:4 * H2])              # [o_f | o_b]
        c_new = f_g * c + i_g * g_g
        h_new = o_g * jnp.tanh(c_new)

        # packed-sequence masking, whole-tile blends (no per-row stores)
        valid = fwd_dir_lane * vf + (1.0 - fwd_dir_lane) * vb  # (BP, 2H)
        h = valid * h_new + (1.0 - valid) * h
        c = valid * c_new + (1.0 - valid) * c

        # pad_packed_sequence zeros padded steps before the output Linear
        histf[t] = vf * h_new[:, :H]                           # (BP, H) slab
        histb[s] = vb * h_new[:, H:]                           # (BP, H) slab
        return h, c

    zeros = jnp.zeros((BP, H2), jnp.float32)
    lax.fori_loop(0, T, step, (zeros, zeros))

    # output Linear hoisted out of the time loop: two flattened lane-dense
    # matmuls over the whole history (MXU sees T*BP rows at once).
    hf = histf[...].reshape(T * BP, H)
    hb = histb[...].reshape(T * BP, H)
    o_ref[0] = (
        jnp.dot(hf, woutf_ref[0], preferred_element_type=jnp.float32)
        + jnp.dot(hb, woutb_ref[0], preferred_element_type=jnp.float32)
        + bout_ref[0]
    )


def bilstm_heads(gin, length_pad, p, *, T, BP):
    NH, _, _, GT = gin.shape
    H2 = p["whh"].shape[1]
    H = H2 // 2
    VPk = p["wout_f"].shape[2]
    grid_spec = pltpu.PrefetchScalarGridSpec(
        num_scalar_prefetch=0,
        grid=(NH,),
        in_specs=[
            pl.BlockSpec((BP, 1), lambda h: (0, 0)),              # lengths
            pl.BlockSpec((1, T, BP, GT), lambda h: (h, 0, 0, 0)),  # gin
            pl.BlockSpec((1, H2, GT), lambda h: (h, 0, 0)),        # whh (blockdiag)
            pl.BlockSpec((1, H, VPk), lambda h: (h, 0, 0)),        # wout fwd
            pl.BlockSpec((1, H, VPk), lambda h: (h, 0, 0)),        # wout bwd
            pl.BlockSpec((1, 1, VPk), lambda h: (h, 0, 0)),        # b_out
        ],
        out_specs=pl.BlockSpec((1, T * BP, VPk), lambda h: (h, 0, 0)),
        scratch_shapes=[
            pltpu.VMEM((T, BP, H), jnp.float32),   # forward hidden history
            pltpu.VMEM((T, BP, H), jnp.float32),   # backward hidden history
        ],
    )
    return pl.pallas_call(
        _bilstm_heads_kernel,
        out_shape=jax.ShapeDtypeStruct((NH, T * BP, VPk), jnp.float32),
        grid_spec=grid_spec,
        compiler_params=pltpu.CompilerParams(
            dimension_semantics=("parallel",)),
    )(length_pad, gin, p["whh"], p["wout_f"], p["wout_b"], p["b_out"])


# ------------------------------- parameters ----------------------------------
def init_params(key):
    """Weights pre-stacked over heads, gate lanes PACKED (8*H wide, interleaved
    [i_f|i_b|f_f|f_b|g_f|g_b|o_f|o_b]); vocab width lane-padded to VP with zero
    columns (transparent, cropped on output)."""
    D, H = LINEAR_DIM, HIDDEN
    G = 4 * H                       # per-direction gate width
    GT = 2 * G                      # packed both-direction gate width (8*H)
    keys = iter(jax.random.split(key, 64))

    def unif(shape, scale):
        return jax.random.uniform(next(keys), shape, jnp.float32, -scale, scale)

    def interleave(w_f, w_b):       # (rows,4H),(rows,4H) -> (rows,8H) interleaved
        out = jnp.zeros((w_f.shape[0], GT), jnp.float32)
        for g in range(4):
            out = out.at[:, (2 * g) * H:(2 * g + 1) * H].set(w_f[:, g * H:(g + 1) * H])
            out = out.at[:, (2 * g + 1) * H:(2 * g + 2) * H].set(w_b[:, g * H:(g + 1) * H])
        return out

    s_lstm = 1.0 / math.sqrt(H)
    s_lin = 1.0 / math.sqrt(2 * H)

    params = {
        "feat_w": unif((HOP, D), 1.0 / math.sqrt(HOP)),
        "feat_b": unif((1, D), 1.0 / math.sqrt(HOP)),
    }

    wih, b_in, whh, wout_f, wout_b, b_out = [], [], [], [], [], []
    for lang in LANGS:
        V1 = LANG2VOCAB[lang] + 1
        wih.append(interleave(unif((D, G), s_lstm), unif((D, G), s_lstm)))     # (D, 8H)
        b_in.append(interleave(unif((1, G), s_lstm), unif((1, G), s_lstm)))    # (1, 8H)
        # block-diagonal recurrent weight: rows 0:H = forward hidden, rows H:2H
        # = backward hidden; columns interleaved exactly like the gates.
        whh_fwd = interleave(unif((H, G), s_lstm), jnp.zeros((H, G), jnp.float32))
        whh_bwd = interleave(jnp.zeros((H, G), jnp.float32), unif((H, G), s_lstm))
        whh.append(jnp.concatenate([whh_fwd, whh_bwd], axis=0))                # (2H, 8H)
        wout_f.append(jnp.zeros((H, VP), jnp.float32)
                      .at[:, :V1].set(unif((H, V1), s_lin)))
        wout_b.append(jnp.zeros((H, VP), jnp.float32)
                      .at[:, :V1].set(unif((H, V1), s_lin)))
        b_out.append(jnp.zeros((1, VP), jnp.float32)
                     .at[:, :V1].set(unif((1, V1), s_lin)))

    params.update({
        "wih": jnp.stack(wih), "b_in": jnp.stack(b_in), "whh": jnp.stack(whh),
        "wout_f": jnp.stack(wout_f), "wout_b": jnp.stack(wout_b),
        "b_out": jnp.stack(b_out),
    })
    return params


# ------------------------------ forward (glue) --------------------------------
def wav2vec_muti_model_forward(batch_list, params, lang=None):
    """batch_list: list of 1-D waveforms (variable lengths), like the torch module."""
    B = len(batch_list)
    max_len = max(x.shape[0] for x in batch_list)
    T = max_len // HOP
    BP = ((B + 7) // 8) * 8          # sublane-pad the batch (padded rows: len 0)
    TBP = T * BP

    wave = jnp.stack(
        [jnp.pad(x, (0, max_len - x.shape[0])) for x in batch_list])   # (B, Lmax)

    # time-major frames: row t*BP + b holds wave[b, t*HOP:(t+1)*HOP]
    frames = wave[:, :T * HOP].reshape(B, T, HOP)
    frames = jnp.pad(frames, ((0, BP - B), (0, 0), (0, 0)))            # (BP, T, HOP)
    frames = frames.transpose(1, 0, 2).reshape(TBP, HOP)               # (T*BP, HOP)

    # feature-frame lengths, same arithmetic as the torch module
    percents = [x.shape[0] / max_len for x in batch_list]
    length = jnp.floor(jnp.array([p * T for p in percents],
                                 jnp.float32)).astype(jnp.int32)       # (B,)
    length_pad = jnp.zeros((BP, 1), jnp.int32).at[:B, 0].set(length)
    # NOTE: max(length) == T (longest item has percent 1.0), so the
    # pad_packed_sequence output time dimension equals T.

    head_keys = ("wih", "b_in", "whh", "wout_f", "wout_b", "b_out")
    if lang is None:
        langs = LANGS
        head_p = {k: params[k] for k in head_keys}
    else:
        i = LANGS.index(lang)
        langs = [lang]
        head_p = {k: params[k][i:i + 1] for k in head_keys}
    NH = len(langs)

    # Fold the (synthetic, linear) featurizer into the input projection:
    # (frames @ feat_w + feat_b) @ wih + b_in == frames @ (feat_w @ wih) + b_fold
    w_fold = jnp.einsum("hd,ndg->nhg", params["feat_w"], head_p["wih"])   # (NH, HOP, 8H)
    b_fold = (jnp.einsum("od,ndg->nog", params["feat_b"], head_p["wih"])
              + head_p["b_in"])                                           # (NH, 1, 8H)

    # large row tiles for the projection (per-grid-step overhead amortization)
    rb = next((r for r in (512, 256, 128, 64, 32, 16, 8) if TBP % r == 0), TBP)
    gin = input_projection(frames, w_fold, b_fold, row_block=rb)          # (NH, TBP, 8H)
    GT = w_fold.shape[2]
    gin = gin.reshape(NH, T, BP, GT)    # free row-major reshape (time-major)

    out = bilstm_heads(gin, length_pad, head_p, T=T, BP=BP)               # (NH, T*BP, VP)
    out = (out.reshape(NH, T, BP, VP)[:, :, :B, :]                        # crop batch pad
           .transpose(0, 2, 1, 3))                                        # (NH, B, T, VP)

    res = {}
    for i, key in enumerate(langs):
        res[key] = out[i, :, :, :LANG2VOCAB[key] + 1]                     # crop lane pad
    return res


if __name__ == "__main__":
    root = jax.random.PRNGKey(0)
    pkey, d0, d1 = jax.random.split(root, 3)
    params = init_params(pkey)

    # two raw waveforms of different lengths (list input, like the torch module)
    batch = [
        jax.random.normal(d0, (640,), jnp.float32),   # 640 samples -> 16 valid frames
        jax.random.normal(d1, (480,), jnp.float32),   # 480 samples -> 12 valid frames
    ]

    res = wav2vec_muti_model_forward(batch, params, lang=None)
    for v in res.values():
        jax.block_until_ready(v)

    assert res["en"].shape == (2, 16, LANG2VOCAB["en"] + 1)
    assert res["zh"].shape == (2, 16, LANG2VOCAB["zh"] + 1)
    print("KERNEL_OK")
</pallas_src>

<mosaic_0001>
module attributes {stable_mosaic.version = 11 : i64} {
  func.func @_proj_kernel(%arg0: i32, %arg1: i32, %arg2: memref<128x40xf32, #tpu.memory_space<vmem>>, %arg3: memref<1x40x128xf32, #tpu.memory_space<vmem>>, %arg4: memref<1x1x128xf32, #tpu.memory_space<vmem>>, %arg5: memref<1x128x128xf32, #tpu.memory_space<vmem>>) attributes {dimension_semantics = [#tpu.dimension_semantics<parallel>, #tpu.dimension_semantics<parallel>], iteration_bounds = array<i64: 2, 1>, scalar_prefetch = 0 : i64, scratch_operands = 0 : i64, tpu.core_type = #tpu.core_type<tc>, window_params = [{transform_indices = @transform_0, window_bounds = array<i64: 128, 40>}, {transform_indices = @transform_1, window_bounds = array<i64: 1, 40, 128>}, {transform_indices = @transform_2, window_bounds = array<i64: 1, 1, 128>}, {transform_indices = @transform_3, window_bounds = array<i64: 1, 128, 128>}]} {
    %c0 = arith.constant 0 : index
    %c0_0 = arith.constant 0 : index
    %0 = vector.load %arg2[%c0, %c0_0] : memref<128x40xf32, #tpu.memory_space<vmem>>, vector<128x40xf32>
    %c0_1 = arith.constant 0 : index
    %c0_2 = arith.constant 0 : index
    %c0_3 = arith.constant 0 : index
    %1 = vector.load %arg3[%c0_1, %c0_2, %c0_3] : memref<1x40x128xf32, #tpu.memory_space<vmem>>, vector<1x40x128xf32>
    %2 = vector.shape_cast %1 : vector<1x40x128xf32> to vector<40x128xf32>
    %cst = arith.constant dense<0.000000e+00> : vector<128x128xf32>
    %3 = tpu.matmul %0, %2, %cst {dimension_numbers = #tpu.dot_dimension_numbers<[1], [0], [0], [1], [0, 0, 1, 1], [], []>} : vector<128x40xf32>, vector<40x128xf32>, vector<128x128xf32> -> vector<128x128xf32>
    %c0_4 = arith.constant 0 : index
    %c0_5 = arith.constant 0 : index
    %c0_6 = arith.constant 0 : index
    %4 = vector.load %arg4[%c0_4, %c0_5, %c0_6] : memref<1x1x128xf32, #tpu.memory_space<vmem>>, vector<1x1x128xf32>
    %5 = vector.shape_cast %4 : vector<1x1x128xf32> to vector<1x128xf32>
    %6 = vector.broadcast %5 : vector<1x128xf32> to vector<128x128xf32>
    %7 = arith.addf %3, %6 : vector<128x128xf32>
    %c0_7 = arith.constant 0 : index
    %c0_8 = arith.constant 0 : index
    %c0_9 = arith.constant 0 : index
    %8 = vector.load %arg5[%c0_7, %c0_8, %c0_9] : memref<1x128x128xf32, #tpu.memory_space<vmem>>, vector<1x128x128xf32>
    %9 = vector.shape_cast %8 : vector<1x128x128xf32> to vector<128x128xf32>
    %10 = vector.shape_cast %7 : vector<128x128xf32> to vector<1x128x128xf32>
    tpu.vector_store %arg5[%c0_7, %c0_8, %c0_9], %10 {strides = array<i32>} : memref<1x128x128xf32, #tpu.memory_space<vmem>>, vector<1x128x128xf32>,
    return
  }
  func.func @transform_0(%arg0: i32, %arg1: i32) -> (i32, i32) {
    %c0_i32 = arith.constant 0 : i32
    %c0_i32_0 = arith.constant 0 : i32
    return %arg1, %c0_i32 : i32, i32
  }
  func.func @transform_1(%arg0: i32, %arg1: i32) -> (i32, i32, i32) {
    %c0_i32 = arith.constant 0 : i32
    %c0_i32_0 = arith.constant 0 : i32
    %c0_i32_1 = arith.constant 0 : i32
    return %arg0, %c0_i32, %c0_i32_0 : i32, i32, i32
  }
  func.func @transform_2(%arg0: i32, %arg1: i32) -> (i32, i32, i32) {
    %c0_i32 = arith.constant 0 : i32
    %c0_i32_0 = arith.constant 0 : i32
    %c0_i32_1 = arith.constant 0 : i32
    return %arg0, %c0_i32, %c0_i32_0 : i32, i32, i32
  }
  func.func @transform_3(%arg0: i32, %arg1: i32) -> (i32, i32, i32) {
    %c0_i32 = arith.constant 0 : i32
    %c0_i32_0 = arith.constant 0 : i32
    return %arg0, %arg1, %c0_i32 : i32, i32, i32
  }
}

</mosaic_0001>

<llo_original>
// kernel: tpu_custom_call.1
$region0: #{tpu_custom_call.1}
  #allocation0 [shape = 'u32[]', space=smem, size = 0x4, offset = 0x4, fixed_abs, tag = 'smem constant byte address 0x4 - core index']
  #allocation1 [shape = 'u32[72,128]{1,0:T(1,128)}', space=vmem, size = 0x9000, scoped, tag = 'internal scratch']
  %s0 = inlined_call_operand.vmem [shape: f32[128,40], index: 0, kind: input, shape index: {}]
  %s1 = inlined_call_operand.vmem [shape: f32[2,40,128], index: 1, kind: input, shape index: {}]
  %s2 = inlined_call_operand.vmem [shape: f32[2,1,128], index: 2, kind: input, shape index: {}]
  %s3 = inlined_call_operand.hbm [shape: f32[2,128,128], index: 3, kind: output, shape index: {}]
  %s4 = sld [smem:[#allocation0]]
  $region45: #{tpu_custom_call.1} parent=0
    _
  %s6 = ssub.s32 1, %s4
  %s7 = scalar_select 0, %s6, %s4
  $region1: #{tpu_custom_call.1} parent=0
    #allocation2 [shape = 'u8[131072]{0}', space=vmem, size = 0x20000, scoped, tag = 'output window, operand 0']
    #allocation3 [shape = 's32[2]{0}', space=sflag, size = 0x8, scoped, tag = 'scoped memory for tpu_custom_call.1']
    %8 = vsyncpa [#allocation3], 0
    %s9 = scalar_lea.sflag [#allocation3], 1
    %10 = vsyncpa %s9, 0
    loop: start=0, step=1, limit=4
    $region2: #{tpu_custom_call.1} parent=1 // loop_pre_header
      _
    $region3: #{tpu_custom_call.1} parent=1 // loop_header
      %s12 = sphi 0, %s16
      %p13 = scmp.ge.s32.totalorder %s12, 4
      %s19 = sphi 0, %s31
      %s20 = sphi 0, %s27
      %s21 = sphi 0, %s19
      %s22 = sphi 0, %s20
      %s23 = sphi 0, %s21
      %s24 = sphi 0, %s22
      %s34 = sphi 0, %s36
      %s37 = sphi 0, %s34
      %s38 = sphi 0, %s37
      %s54 = sphi 0, %s38
      %s60 = sphi 0, %s62
      %s63 = sphi 0, %s60
      %s64 = sphi 0, %s63
      %s80 = sphi 0, %s64
      %s86 = sphi 0, %s88
      %s89 = sphi 0, %s86
      %s90 = sphi 0, %s89
      %s106 = sphi 0, %s90
      %s114 = sphi 0, %s116
      %s117 = sphi 0, %s114
      %s118 = sphi 0, %s117
      %s134 = sphi 0, %s118
    $region4: #{tpu_custom_call.1} parent=1 // loop_header_branch
      %15 = sbr.rel (%p13) target = $region8
    $region5: #{tpu_custom_call.1} parent=1 // loop_body
      %s17 = ssub.s32 %s12, 1
      %s18 = ssub.s32 %s12, 2
      %s25 = sadd.s32 1, %s20
      %p26 = scmp.ge.s32.totalorder %s25, 1
      %s27 = scalar_select %p26, 0, %s25
      %s28 = sadd.s32 1, %s19
      %s29 = scalar_select %p26, %s28, %s19
      %p30 = scmp.ge.s32.totalorder %s29, 2
      %s31 = scalar_select %p30, 0, %s29
      %s32 = ssub.s32 %s20, %s27
      %p33 = scmp.eq.s32.totalorder %s32, 0
      %s35 = sadd.s32 %s34, 1
      %s36 = scalar_select %p33, %s34, %s35
      %p39 = pneg %p33
      %p40 = scmp.eq.s32.totalorder %s12, 1
      %p41 = por %p39, %p40
      %p42 = scmp.ne.s32.totalorder %s34, %s37
      %p43 = scmp.eq.s32.totalorder %s12, 0
      %p44 = por %p42, %p43
      %p45 = scmp.ne.s32.totalorder %s34, %s37
      %p46 = scmp.eq.s32.totalorder %s17, 1
      %p47 = por %p45, %p46
      %p48 = scmp.ne.s32.totalorder %s37, %s38
      %p49 = scmp.eq.s32.totalorder %s17, 0
      %p50 = por %p48, %p49
      %p51 = scmp.ne.s32.totalorder %s37, %s38
      %p52 = scmp.eq.s32.totalorder %s18, 1
      %p53 = por %p51, %p52
      %p55 = scmp.ne.s32.totalorder %s38, %s54
      %p56 = scmp.eq.s32.totalorder %s18, 0
      %p57 = por %p55, %p56
      %s58 = ssub.s32 %s19, %s31
      %p59 = scmp.eq.s32.totalorder %s58, 0
      %s61 = sadd.s32 %s60, 1
      %s62 = scalar_select %p59, %s60, %s61
      %p65 = pneg %p59
      %p66 = scmp.eq.s32.totalorder %s12, 1
      %p67 = por %p65, %p66
      %p68 = scmp.ne.s32.totalorder %s60, %s63
      %p69 = scmp.eq.s32.totalorder %s12, 0
      %p70 = por %p68, %p69
      %p71 = scmp.ne.s32.totalorder %s60, %s63
      %p72 = scmp.eq.s32.totalorder %s17, 1
      %p73 = por %p71, %p72
      %p74 = scmp.ne.s32.totalorder %s63, %s64
      %p75 = scmp.eq.s32.totalorder %s17, 0
      %p76 = por %p74, %p75
      %p77 = scmp.ne.s32.totalorder %s63, %s64
      %p78 = scmp.eq.s32.totalorder %s18, 1
      %p79 = por %p77, %p78
      %p81 = scmp.ne.s32.totalorder %s64, %s80
      %p82 = scmp.eq.s32.totalorder %s18, 0
      %p83 = por %p81, %p82
      %s84 = ssub.s32 %s19, %s31
      %p85 = scmp.eq.s32.totalorder %s84, 0
      %s87 = sadd.s32 %s86, 1
      %s88 = scalar_select %p85, %s86, %s87
      %p91 = pneg %p85
      %p92 = scmp.eq.s32.totalorder %s12, 1
      %p93 = por %p91, %p92
      %p94 = scmp.ne.s32.totalorder %s86, %s89
      %p95 = scmp.eq.s32.totalorder %s12, 0
      %p96 = por %p94, %p95
      %p97 = scmp.ne.s32.totalorder %s86, %s89
      %p98 = scmp.eq.s32.totalorder %s17, 1
      %p99 = por %p97, %p98
      %p100 = scmp.ne.s32.totalorder %s89, %s90
      %p101 = scmp.eq.s32.totalorder %s17, 0
      %p102 = por %p100, %p101
      %p103 = scmp.ne.s32.totalorder %s89, %s90
      %p104 = scmp.eq.s32.totalorder %s18, 1
      %p105 = por %p103, %p104
      %p107 = scmp.ne.s32.totalorder %s90, %s106
      %p108 = scmp.eq.s32.totalorder %s18, 0
      %p109 = por %p107, %p108
      %s110 = ssub.s32 %s19, %s31
      %s111 = ssub.s32 %s20, %s27
      %s112 = sor.u32 %s110, %s111
      %p113 = scmp.eq.s32.totalorder %s112, 0
      %s115 = sadd.s32 %s114, 1
      %s116 = scalar_select %p113, %s114, %s115
      %p119 = pneg %p113
      %p120 = scmp.eq.s32.totalorder %s12, 1
      %p121 = por %p119, %p120
      %p122 = scmp.ne.s32.totalorder %s114, %s117
      %p123 = scmp.eq.s32.totalorder %s12, 0
      %p124 = por %p122, %p123
      %p125 = scmp.ne.s32.totalorder %s114, %s117
      %p126 = scmp.eq.s32.totalorder %s17, 1
      %p127 = por %p125, %p126
      %p128 = scmp.ne.s32.totalorder %s117, %s118
      %p129 = scmp.eq.s32.totalorder %s17, 0
      %p130 = por %p128, %p129
      %p131 = scmp.ne.s32.totalorder %s117, %s118
      %p132 = scmp.eq.s32.totalorder %s18, 1
      %p133 = por %p131, %p132
      %p135 = scmp.ne.s32.totalorder %s118, %s134
      %p136 = scmp.eq.s32.totalorder %s18, 0
      %p137 = por %p135, %p136
      %p138 = scmp.le.s32.totalorder 1, %s12
      %p139 = scmp.lt.s32.totalorder %s12, 3
      %p140 = pnand %p138, %p139
      %p141 = pneg %p140
      // Predicated region
      $region9: #{tpu_custom_call.1} parent=5 // pred_check
        _
      $region10: #{tpu_custom_call.1} parent=5 // pred_check_branch
        %143 = sbr.rel (%p140) target = $region12
      $region11: #{tpu_custom_call.1} parent=5 // pred_region
        %s144 = ssub.s32 %s12, 1
        // Predicated region
        $region13: #{tpu_custom_call.1} parent=11 // pred_check
          %p145 = pneg %p50
        $region14: #{tpu_custom_call.1} parent=11 // pred_check_branch
          %147 = sbr.rel (%p145) target = $region16
        $region15: #{tpu_custom_call.1} parent=11 // pred_region
          %s148 = smul.u32 16, %s22
          %p149 = scmp.lt.s32.totalorder %s148, 15
          %s150 = scalar_select %p149, %s148, 15
          %s151 = smul.addr %s150, 8
          %s152 = scalar_lea.vmem %s0, %s151
          %s153 = smul.u32 16, %s22
        $region16: #{tpu_custom_call.1} parent=11 // pred_fallthru
          _
      $region12: #{tpu_custom_call.1} parent=5 // pred_fallthru
        _
      %p154 = scmp.lt.s32.totalorder %s12, 2
      // Predicated region
      $region17: #{tpu_custom_call.1} parent=5 // pred_check
        %p155 = pneg %p154
      $region18: #{tpu_custom_call.1} parent=5 // pred_check_branch
        %157 = sbr.rel (%p155) target = $region20
      $region19: #{tpu_custom_call.1} parent=5 // pred_region
        // Predicated region
        $region21: #{tpu_custom_call.1} parent=19 // pred_check
          %p158 = pneg %p70
        $region22: #{tpu_custom_call.1} parent=19 // pred_check_branch
          %160 = sbr.rel (%p158) target = $region24
        $region23: #{tpu_custom_call.1} parent=19 // pred_region
          %p161 = scmp.lt.s32.totalorder %s19, 1
          %s162 = scalar_select %p161, %s19, 1
          %s163 = smul.addr %s162, 5
          %s164 = smul.addr %s163, 8
          %s165 = scalar_lea.vmem %s1, %s164
        $region24: #{tpu_custom_call.1} parent=19 // pred_fallthru
          _
        // Predicated region
        $region25: #{tpu_custom_call.1} parent=19 // pred_check
          %p166 = pneg %p96
        $region26: #{tpu_custom_call.1} parent=19 // pred_check_branch
          %168 = sbr.rel (%p166) target = $region28
        $region27: #{tpu_custom_call.1} parent=19 // pred_region
          %p169 = scmp.lt.s32.totalorder %s19, 1
          %s170 = scalar_select %p169, %s19, 1
          %s171 = scalar_lea.vmem %s2, %s170
        $region28: #{tpu_custom_call.1} parent=19 // pred_fallthru
          _
      $region20: #{tpu_custom_call.1} parent=5 // pred_fallthru
        _
      %p172 = scmp.le.s32.totalorder 1, %s12
      %p173 = scmp.lt.s32.totalorder %s12, 3
      %p174 = pnand %p172, %p173
      %p175 = pneg %p174
      // Predicated region
      $region29: #{tpu_custom_call.1} parent=5 // pred_check
        _
      $region30: #{tpu_custom_call.1} parent=5 // pred_check_branch
        %177 = sbr.rel (%p174) target = $region32
      $region31: #{tpu_custom_call.1} parent=5 // pred_region
        %s178 = ssub.s32 %s12, 1
        %s179 = smul.u32 16, %s22
        %p180 = scmp.lt.s32.totalorder %s179, 15
        %s181 = scalar_select %p180, %s179, 15
        %s182 = smul.addr %s181, 8
        %s183 = scalar_lea.vmem %s0, %s182
        %p184 = pneg %p50
        %p185 = pneg %p47
        %p186 = scmp.lt.s32.totalorder %s21, 1
        %s187 = scalar_select %p186, %s21, 1
        %s188 = smul.addr %s187, 5
        %s189 = smul.addr %s188, 8
        %s190 = scalar_lea.vmem %s1, %s189
        %p191 = pneg %p76
        %p192 = pneg %p73
        %p193 = scmp.lt.s32.totalorder %s21, 1
        %s194 = scalar_select %p193, %s21, 1
        %s195 = scalar_lea.vmem %s2, %s194
        %p196 = pneg %p102
        %p197 = pneg %p99
        %p198 = pneg %p130
        %p199 = pneg %p127
        %s200 = sand.u32 %s117, 1
        %s201 = scalar_lea.sflag [#allocation3], %s200
        %s202 = sand.u32 %s117, 1
        %s203 = smul.addr %s202, 128
        %s204 = scalar_lea.vmem [#allocation2], %s203
        %s205 = smul.u32 16, %s22
        %p206 = scmp.lt.s32.totalorder %s205, 15
        %s207 = scalar_select %p206, %s205, 15
        %s208 = smul.addr %s207, 8
        %s209 = scalar_lea.vmem %s0, %s208
        %s210 = smul.u32 16, %s22
        %p211 = scmp.lt.s32.totalorder %s21, 1
        %s212 = scalar_select %p211, %s21, 1
        %s213 = smul.addr %s212, 5
        %s214 = smul.addr %s213, 8
        %s215 = scalar_lea.vmem %s1, %s214
        %p216 = scmp.lt.s32.totalorder %s21, 1
        %s217 = scalar_select %p216, %s21, 1
        %s218 = scalar_lea.vmem %s2, %s217
        %s219 = smul.u32 16, %s22
        %v220 = vld [vmem:[%s209] sm:$0xff]
        %v221 = vld [vmem:[%s209 + $0x8] sm:$0xff]
        %v222 = vld [vmem:[%s209 + $0x10] sm:$0xff]
        %v223 = vld [vmem:[%s209 + $0x18] sm:$0xff]
        %v224 = vld [vmem:[%s209 + $0x20] sm:$0xff]
        %v225 = vld [vmem:[%s209 + $0x28] sm:$0xff]
        %v226 = vld [vmem:[%s209 + $0x30] sm:$0xff]
        %v227 = vld [vmem:[%s209 + $0x38] sm:$0xff]
        %v228 = vld [vmem:[%s209 + $0x40] sm:$0xff]
        %v229 = vld [vmem:[%s209 + $0x48] sm:$0xff]
        %v230 = vld [vmem:[%s209 + $0x50] sm:$0xff]
        %v231 = vld [vmem:[%s209 + $0x58] sm:$0xff]
        %v232 = vld [vmem:[%s209 + $0x60] sm:$0xff]
        %v233 = vld [vmem:[%s209 + $0x68] sm:$0xff]
        %v234 = vld [vmem:[%s209 + $0x70] sm:$0xff]
        %v235 = vld [vmem:[%s209 + $0x78] sm:$0xff]
        %v236 = vld [vmem:[%s215] sm:$0xff]
        %v237 = vld [vmem:[%s215 + $0x8] sm:$0xff]
        %v238 = vld [vmem:[%s215 + $0x10] sm:$0xff]
        %v239 = vld [vmem:[%s215 + $0x18] sm:$0xff]
        %v240 = vld [vmem:[%s215 + $0x20] sm:$0xff]
        %v241 = vld [vmem:[%s218] sm:$0x1]
        %v243 = vperm.slane %v241, 0
        %vm245 = vcmask 326656
        %v247 = vsel %vm245, %v220, 0
        %v250 = vsel %vm245, %v221, 0
        %v253 = vsel %vm245, %v222, 0
        %v256 = vsel %vm245, %v223, 0
        %v259 = vsel %vm245, %v224, 0
        %v262 = vsel %vm245, %v225, 0
        %v265 = vsel %vm245, %v226, 0
        %v268 = vsel %vm245, %v227, 0
        %v271 = vsel %vm245, %v228, 0
        %v274 = vsel %vm245, %v229, 0
        %v277 = vsel %vm245, %v230, 0
        %v280 = vsel %vm245, %v231, 0
        %v283 = vsel %vm245, %v232, 0
        %v286 = vsel %vm245, %v233, 0
        %v289 = vsel %vm245, %v234, 0
        %v292 = vsel %vm245, %v235, 0
        %294 = vmatpush.msra.mxu0 0.0
        %295 = vmatpush.msra.mxu0 0.0
        %296 = vmatpush.msra.mxu0 0.0
        %297 = vmatpush.msra.mxu0 0.0
        %298 = vmatpush.msra.mxu0 0.0
        %299 = vmatpush.msra.mxu0 0.0
        %300 = vmatpush.msra.mxu0 0.0
        %301 = vmatpush.msra.mxu0 0.0
        %302 = vmatpush.msra.mxu0 0.0
        %303 = vmatpush.msra.mxu0 0.0
        %304 = vmatpush.msra.mxu0 0.0
        %305 = vmatpush.msra.mxu0 %v240
        %306 = vmatpush.msra.mxu0 %v239
        %307 = vmatpush.msra.mxu0 %v238
        %308 = vmatpush.msra.mxu0 %v237
        %309 = vmatpush.msra.mxu0 %v236
        %310 = vmatmul.f32.gmra.mxu0 %v247
        %v311 = vpop.f32.mrf.mxu0
        %v312 = vadd.f32 %v243, %v311
        %313 = vmatmul.f32.gmra.mxu0 %v250
        %v314 = vpop.f32.mrf.mxu0
        %v315 = vadd.f32 %v243, %v314
        %316 = vmatmul.f32.gmra.mxu0 %v253
        %v317 = vpop.f32.mrf.mxu0
        %v318 = vadd.f32 %v243, %v317
        %319 = vmatmul.f32.gmra.mxu0 %v256
        %v320 = vpop.f32.mrf.mxu0
        %v321 = vadd.f32 %v243, %v320
        %322 = vmatmul.f32.gmra.mxu0 %v259
        %v323 = vpop.f32.mrf.mxu0
        %v324 = vadd.f32 %v243, %v323
        %325 = vmatmul.f32.gmra.mxu0 %v262
        %v326 = vpop.f32.mrf.mxu0
        %v327 = vadd.f32 %v243, %v326
        %328 = vmatmul.f32.gmra.mxu0 %v265
        %v329 = vpop.f32.mrf.mxu0
        %v330 = vadd.f32 %v243, %v329
        %331 = vmatmul.f32.gmra.mxu0 %v268
        %v332 = vpop.f32.mrf.mxu0
        %v333 = vadd.f32 %v243, %v332
        %334 = vmatmul.f32.gmra.mxu0 %v271
        %v335 = vpop.f32.mrf.mxu0
        %v336 = vadd.f32 %v243, %v335
        %337 = vmatmul.f32.gmra.mxu0 %v274
        %v338 = vpop.f32.mrf.mxu0
        %v339 = vadd.f32 %v243, %v338
        %340 = vmatmul.f32.gmra.mxu0 %v277
        %v341 = vpop.f32.mrf.mxu0
        %v342 = vadd.f32 %v243, %v341
        %343 = vmatmul.f32.gmra.mxu0 %v280
        %v344 = vpop.f32.mrf.mxu0
        %v345 = vadd.f32 %v243, %v344
        %346 = vmatmul.f32.gmra.mxu0 %v283
        %v347 = vpop.f32.mrf.mxu0
        %v348 = vadd.f32 %v243, %v347
        %349 = vmatmul.f32.gmra.mxu0 %v286
        %v350 = vpop.f32.mrf.mxu0
        %v351 = vadd.f32 %v243, %v350
        %352 = vmatmul.f32.gmra.mxu0 %v289
        %v353 = vpop.f32.mrf.mxu0
        %v354 = vadd.f32 %v243, %v353
        %355 = vmatmul.f32.gmra.mxu0 %v292
        %v356 = vpop.f32.mrf.mxu0
        %v357 = vadd.f32 %v243, %v356
        %358 = vdwg.mxu0
        %359 = vst [vmem:[%s204] sm:$0xff] %v312
        %360 = vst [vmem:[%s204 + $0x8] sm:$0xff] %v315
        %361 = vst [vmem:[%s204 + $0x10] sm:$0xff] %v318
        %362 = vst [vmem:[%s204 + $0x18] sm:$0xff] %v321
        %363 = vst [vmem:[%s204 + $0x20] sm:$0xff] %v324
        %364 = vst [vmem:[%s204 + $0x28] sm:$0xff] %v327
        %365 = vst [vmem:[%s204 + $0x30] sm:$0xff] %v330
        %366 = vst [vmem:[%s204 + $0x38] sm:$0xff] %v333
        %367 = vst [vmem:[%s204 + $0x40] sm:$0xff] %v336
        %368 = vst [vmem:[%s204 + $0x48] sm:$0xff] %v339
        %369 = vst [vmem:[%s204 + $0x50] sm:$0xff] %v342
        %370 = vst [vmem:[%s204 + $0x58] sm:$0xff] %v345
        %371 = vst [vmem:[%s204 + $0x60] sm:$0xff] %v348
        %372 = vst [vmem:[%s204 + $0x68] sm:$0xff] %v351
        %373 = vst [vmem:[%s204 + $0x70] sm:$0xff] %v354
        %374 = vst [vmem:[%s204 + $0x78] sm:$0xff] %v357
        %s375 = sand.u32 %s117, 1
        %s376 = scalar_lea.sflag [#allocation3], %s375
        %s377 = sand.u32 %s117, 1
        %s378 = smul.addr %s377, 128
        %s379 = scalar_lea.vmem [#allocation2], %s378
        // Predicated region
        $region33: #{tpu_custom_call.1} parent=31 // pred_check
          %p380 = pneg %p127
        $region34: #{tpu_custom_call.1} parent=31 // pred_check_branch
          %382 = sbr.rel (%p380) target = $region36
        $region35: #{tpu_custom_call.1} parent=31 // pred_region
          %s383 = smul.u32 16, %s22
          %385 = vsyncadd %s376, 0
          %s386 = smul.addr %s21, 16
          %s387 = sadd.s32 %s383, %s386
          %s388 = smul.addr %s387, 8
          %s389 = scalar_lea.hbm %s3, %s388
          %s390 = sshll.u32 %s379, 4
          %s391 = int_to_ptr.vmem [resolvable:$true] %s390
          %s392 = sshll.u32 %s389, 4
          %s393 = int_to_ptr.hbm [resolvable:$true] %s392
          %398 = dma.vmem_to_hbm [thread:$0]  %s391, 2048, %s393, %s376, 128, 128, 8
        $region36: #{tpu_custom_call.1} parent=31 // pred_fallthru
          _
      $region32: #{tpu_custom_call.1} parent=5 // pred_fallthru
        _
      %p399 = scmp.le.s32.totalorder 2, %s12
      // Predicated region
      $region37: #{tpu_custom_call.1} parent=5 // pred_check
        %p400 = pneg %p399
      $region38: #{tpu_custom_call.1} parent=5 // pred_check_branch
        %402 = sbr.rel (%p400) target = $region40
      $region39: #{tpu_custom_call.1} parent=5 // pred_region
        %s403 = ssub.s32 %s12, 2
        // Predicated region
        $region41: #{tpu_custom_call.1} parent=39 // pred_check
          %p404 = pneg %p133
        $region42: #{tpu_custom_call.1} parent=39 // pred_check_branch
          %406 = sbr.rel (%p404) target = $region44
        $region43: #{tpu_custom_call.1} parent=39 // pred_region
          %s407 = sand.u32 %s118, 1
          %s408 = scalar_lea.sflag [#allocation3], %s407
          %s409 = sand.u32 %s118, 1
          %s410 = smul.addr %s409, 128
          %s411 = scalar_lea.vmem [#allocation2], %s410
          %413 = dma.done %s408, 2048
        $region44: #{tpu_custom_call.1} parent=39 // pred_fallthru
          _
      $region40: #{tpu_custom_call.1} parent=5 // pred_fallthru
        _
    $region6: #{tpu_custom_call.1} parent=1 // loop_footer
      %s16 = sadd.s32 1, %s12
    $region7: #{tpu_custom_call.1} parent=1 // loop_footer_branch
      %11 = sbr.rel target = $region3
    $region8: #{tpu_custom_call.1} parent=1 // loop_exit
      _
    %414 = vsyncpa [#allocation3], 1
    %s415 = scalar_lea.sflag [#allocation3], 1
    %416 = vsyncpa %s415, 1

</llo_original>
